<compile_context>
chip_gen: v6e
topology: v6e:2x2x1
jax: 0.10.0
libtpu: 0.0.40
codegen_flags: <defaults>
</compile_context>

<pallas_src>
from functools import partial

import jax
import jax.numpy as jnp
from jax.experimental import pallas as pl
from jax.experimental.pallas import tpu as pltpu


Z_DIM = 8           # module default
HID = 32            # dense_enc1 output width
LANES = 128         # packed slab width (one full lane group)
TILE_B_MAX = 1024   # batch rows per grid step (multiple of 8; ~2 MiB/step VMEM)


def _softplus(x):
    # Numerically stable, single-expression softplus (halves EUP pushes vs. where()).
    return jnp.maximum(x, 0.0) + jnp.log1p(jnp.exp(-jnp.abs(x)))


def cvae_kernel(z_dim, in_ref, wbig_ref, bbig_ref, wmv_ref, bmv_ref, wdz_ref, out_ref):
    zz = z_dim * z_dim

    packed = in_ref[...]                               # (TB, 128) = [x | bic | eps | 0]
    eps = packed[:, zz + z_dim: zz + 2 * z_dim]        # (TB, z)

    # --- stage 1: one 128x128 MXU push ----------------------------------------
    #   lanes [0, zz)      -> bic @ W_dec_bic + b_dec  (decoder bias term)
    #   lanes [zz, zz+HID) -> x @ W1x + bic @ W1b + b1 (dense_enc1 pre-activation)
    pre = jnp.dot(packed, wbig_ref[...], preferred_element_type=jnp.float32) + bbig_ref[...]
    dec_base = pre[:, :zz]                             # (TB, zz)
    h = jnp.maximum(pre, 0.0)                          # ReLU; only lanes [zz, zz+HID) feed W_mv

    # --- stage 2: fused mean|var head (K zero-padded to 128, N = 2*z) ---------
    mv = jnp.dot(h, wmv_ref[...], preferred_element_type=jnp.float32) + bmv_ref[...]
    mean = mv[:, :z_dim]
    var = _softplus(mv[:, z_dim:2 * z_dim])

    # --- reparameterization: z = mean + sqrt(var) * eps ------------------------
    z_lat = mean + jnp.sqrt(var) * eps                 # (TB, z)

    # --- stage 3: decoder z-path + precomputed bic/bias term -------------------
    logits = jnp.dot(z_lat, wdz_ref[...], preferred_element_type=jnp.float32) + dec_base
    x_recon = jax.nn.sigmoid(logits)                   # (TB, zz)

    # --- lane-dense packed output slab: [x_recon | z | 0] ----------------------
    out_ref[:, :zz] = x_recon
    out_ref[:, zz:zz + z_dim] = z_lat
    out_ref[:, zz + z_dim:] = jnp.zeros(
        (out_ref.shape[0], LANES - zz - z_dim), out_ref.dtype)


def init_params(key, z_dim=Z_DIM):
    """Deterministic synthetic parameters matching the nn.Linear shapes (pre-transposed)."""
    ks = jax.random.split(key, 8)
    in1 = z_dim * z_dim + z_dim
    w1 = jax.random.normal(ks[0], (in1, 32), jnp.float32) * 0.1
    params = dict(
        w1x=w1[: z_dim * z_dim],                       # (z*z, 32)
        w1b=w1[z_dim * z_dim:],                        # (z, 32)
        b1=jax.random.normal(ks[1], (1, 32), jnp.float32) * 0.1,
        wm=jax.random.normal(ks[2], (32, z_dim), jnp.float32) * 0.1,
        bm=jax.random.normal(ks[3], (1, z_dim), jnp.float32) * 0.1,
        wv=jax.random.normal(ks[4], (32, z_dim), jnp.float32) * 0.1,
        bv=jax.random.normal(ks[5], (1, z_dim), jnp.float32) * 0.1,
    )
    wd = jax.random.normal(ks[6], (2 * z_dim, z_dim * z_dim), jnp.float32) * 0.1
    params["wdz"] = wd[:z_dim]                          # (z, z*z)
    params["wdb"] = wd[z_dim:]                          # (z, z*z)
    params["bd"] = jax.random.normal(ks[7], (1, z_dim * z_dim), jnp.float32) * 0.1
    return params


def fuse_params(params, z_dim=Z_DIM):
    """Pack the per-layer weights into the three fused operands the kernel uses."""
    zz = z_dim * z_dim
    f32 = jnp.float32
    # Big first-stage weight: rows = packed-input lanes, cols = stage-1 output lanes.
    w_big = jnp.zeros((LANES, LANES), f32)
    w_big = w_big.at[zz:zz + z_dim, :zz].set(params["wdb"].astype(f32))          # bic -> dec bias
    w_big = w_big.at[:zz, zz:zz + HID].set(params["w1x"].astype(f32))            # x   -> enc1
    w_big = w_big.at[zz:zz + z_dim, zz:zz + HID].set(params["w1b"].astype(f32))  # bic -> enc1
    b_big = jnp.zeros((1, LANES), f32)
    b_big = b_big.at[:, :zz].set(params["bd"].astype(f32))
    b_big = b_big.at[:, zz:zz + HID].set(params["b1"].astype(f32))
    # Fused mean|var head; K zero-padded to 128 so the kernel never slices h.
    w_mv = jnp.zeros((LANES, 2 * z_dim), f32)
    w_mv = w_mv.at[zz:zz + HID, :z_dim].set(params["wm"].astype(f32))
    w_mv = w_mv.at[zz:zz + HID, z_dim:].set(params["wv"].astype(f32))
    b_mv = jnp.concatenate([params["bm"], params["bv"]], axis=1).astype(f32)
    return dict(w_big=w_big, b_big=b_big, w_mv=w_mv, b_mv=b_mv,
                wdz=params["wdz"].astype(f32))


def conditional_vae_forward(x, bic_score, eps, params, z_dim=Z_DIM):
    """x: (B, z_dim, z_dim), bic_score: (B, z_dim), eps: (B, z_dim)."""
    assert z_dim * z_dim + 2 * z_dim <= LANES
    B = x.shape[0]
    zz = z_dim * z_dim
    f32 = jnp.float32

    # Lane-dense packed input slab [x | bic | eps | 0] -- wrapper-side layout plumbing.
    x_flat = x.reshape(B, zz).astype(f32)
    pad = jnp.zeros((B, LANES - zz - 2 * z_dim), f32)
    packed_in = jnp.concatenate(
        [x_flat, bic_score.astype(f32), eps.astype(f32), pad], axis=1)

    fused = fuse_params(params, z_dim)

    # Batch tiling: big tiles get HBM<->VMEM pipelining; for tiny B the whole batch
    # is one block (launch overhead dominates there regardless).
    tile_b = TILE_B_MAX if B >= TILE_B_MAX else B
    grid = (pl.cdiv(B, tile_b),)

    batch_map = lambda i: (i, 0)
    const_map = lambda i: (0, 0)   # weights DMA'd once, VMEM-resident across steps

    out = pl.pallas_call(
        partial(cvae_kernel, z_dim),
        out_shape=jax.ShapeDtypeStruct((B, LANES), f32),
        grid=grid,
        in_specs=[
            pl.BlockSpec((tile_b, LANES), batch_map),        # packed [x|bic|eps|0]
            pl.BlockSpec((LANES, LANES), const_map),         # w_big
            pl.BlockSpec((1, LANES), const_map),             # b_big
            pl.BlockSpec((LANES, 2 * z_dim), const_map),     # w_mv
            pl.BlockSpec((1, 2 * z_dim), const_map),         # b_mv
            pl.BlockSpec((z_dim, zz), const_map),            # wdz
        ],
        out_specs=pl.BlockSpec((tile_b, LANES), batch_map),
        compiler_params=pltpu.CompilerParams(
            dimension_semantics=("parallel",),               # 2-TC sharding on v7x
        ),
    )(packed_in, fused["w_big"], fused["b_big"],
      fused["w_mv"], fused["b_mv"], fused["wdz"])

    x_recon = out[:, :zz].reshape(B, z_dim, z_dim)
    z = out[:, zz:zz + z_dim]
    return x_recon, z


def _reference_forward(x, bic_score, eps, params, z_dim=Z_DIM):
    """Pure-JAX reference (mirrors the PyTorch forward)."""
    B = x.shape[0]
    xf = x.reshape(B, z_dim * z_dim)
    h = jnp.maximum(xf @ params["w1x"] + bic_score @ params["w1b"] + params["b1"], 0.0)
    mean = h @ params["wm"] + params["bm"]
    var = jax.nn.softplus(h @ params["wv"] + params["bv"])
    z = mean + jnp.sqrt(var) * eps
    logits = z @ params["wdz"] + bic_score @ params["wdb"] + params["bd"]
    return jax.nn.sigmoid(logits).reshape(B, z_dim, z_dim), z


def _run_case(B, params, key):
    k_x, k_bic, k_eps = jax.random.split(key, 3)
    x = (jax.random.uniform(k_x, (B, Z_DIM, Z_DIM)) > 0.5).astype(jnp.float32)
    bic = jax.random.uniform(k_bic, (B, Z_DIM), minval=0.4, maxval=2.0)
    eps = jax.random.normal(k_eps, (B, Z_DIM), jnp.float32)
    xr, z = conditional_vae_forward(x, bic, eps, params)
    jax.block_until_ready((xr, z))
    xr_ref, z_ref = _reference_forward(x, bic, eps, params)
    assert xr.shape == (B, Z_DIM, Z_DIM) and z.shape == (B, Z_DIM)
    assert jnp.allclose(xr, xr_ref, atol=1e-4, rtol=1e-4)
    assert jnp.allclose(z, z_ref, atol=1e-4, rtol=1e-4)


if __name__ == "__main__":
    key = jax.random.PRNGKey(0)
    k_param, k_small, k_big = jax.random.split(key, 3)
    params = init_params(k_param, Z_DIM)

    _run_case(2, params, k_small)     # tiny batch: single block covering the batch
    _run_case(2500, params, k_big)    # multi-step batch grid incl. partial last tile

    print("KERNEL_OK")
</pallas_src>

<mosaic_0001>
module attributes {stable_mosaic.version = 11 : i64} {
  func.func @cvae_kernel(%arg0: i32, %arg1: memref<2x128xf32, #tpu.memory_space<vmem>>, %arg2: memref<128x128xf32, #tpu.memory_space<vmem>>, %arg3: memref<1x128xf32, #tpu.memory_space<vmem>>, %arg4: memref<128x16xf32, #tpu.memory_space<vmem>>, %arg5: memref<1x16xf32, #tpu.memory_space<vmem>>, %arg6: memref<8x64xf32, #tpu.memory_space<vmem>>, %arg7: memref<2x128xf32, #tpu.memory_space<vmem>>) attributes {dimension_semantics = [#tpu.dimension_semantics<parallel>], iteration_bounds = array<i64: 1>, scalar_prefetch = 0 : i64, scratch_operands = 0 : i64, tpu.core_type = #tpu.core_type<tc>, window_params = [{transform_indices = @transform_0, window_bounds = array<i64: 2, 128>}, {pipeline_mode = #tpu.pipeline_mode<synchronous>, transform_indices = @transform_1, window_bounds = array<i64: 128, 128>}, {pipeline_mode = #tpu.pipeline_mode<synchronous>, transform_indices = @transform_2, window_bounds = array<i64: 1, 128>}, {pipeline_mode = #tpu.pipeline_mode<synchronous>, transform_indices = @transform_3, window_bounds = array<i64: 128, 16>}, {pipeline_mode = #tpu.pipeline_mode<synchronous>, transform_indices = @transform_4, window_bounds = array<i64: 1, 16>}, {pipeline_mode = #tpu.pipeline_mode<synchronous>, transform_indices = @transform_5, window_bounds = array<i64: 8, 64>}, {transform_indices = @transform_6, window_bounds = array<i64: 2, 128>}]} {
    %c0 = arith.constant 0 : index
    %c0_0 = arith.constant 0 : index
    %0 = vector.load %arg1[%c0, %c0_0] : memref<2x128xf32, #tpu.memory_space<vmem>>, vector<2x128xf32>
    %1 = vector.extract_strided_slice %0 {offsets = [0, 72], sizes = [2, 8], strides = [1, 1]} : vector<2x128xf32> to vector<2x8xf32>
    %c0_1 = arith.constant 0 : index
    %c0_2 = arith.constant 0 : index
    %2 = vector.load %arg2[%c0_1, %c0_2] : memref<128x128xf32, #tpu.memory_space<vmem>>, vector<128x128xf32>
    %cst = arith.constant dense<0.000000e+00> : vector<2x128xf32>
    %3 = tpu.matmul %0, %2, %cst {dimension_numbers = #tpu.dot_dimension_numbers<[1], [0], [0], [1], [0, 0, 1, 1], [], []>} : vector<2x128xf32>, vector<128x128xf32>, vector<2x128xf32> -> vector<2x128xf32>
    %c0_3 = arith.constant 0 : index
    %c0_4 = arith.constant 0 : index
    %4 = vector.load %arg3[%c0_3, %c0_4] : memref<1x128xf32, #tpu.memory_space<vmem>>, vector<1x128xf32>
    %5 = vector.broadcast %4 : vector<1x128xf32> to vector<2x128xf32>
    %6 = arith.addf %3, %5 : vector<2x128xf32>
    %7 = vector.extract_strided_slice %6 {offsets = [0, 0], sizes = [2, 64], strides = [1, 1]} : vector<2x128xf32> to vector<2x64xf32>
    %cst_5 = arith.constant 0.000000e+00 : f32
    %8 = vector.broadcast %cst_5 : f32 to vector<2x128xf32>
    %9 = arith.maximumf %6, %8 : vector<2x128xf32>
    %c0_6 = arith.constant 0 : index
    %c0_7 = arith.constant 0 : index
    %10 = vector.load %arg4[%c0_6, %c0_7] : memref<128x16xf32, #tpu.memory_space<vmem>>, vector<128x16xf32>
    %cst_8 = arith.constant dense<0.000000e+00> : vector<2x16xf32>
    %11 = tpu.matmul %9, %10, %cst_8 {dimension_numbers = #tpu.dot_dimension_numbers<[1], [0], [0], [1], [0, 0, 1, 1], [], []>} : vector<2x128xf32>, vector<128x16xf32>, vector<2x16xf32> -> vector<2x16xf32>
    %c0_9 = arith.constant 0 : index
    %c0_10 = arith.constant 0 : index
    %12 = vector.load %arg5[%c0_9, %c0_10] : memref<1x16xf32, #tpu.memory_space<vmem>>, vector<1x16xf32>
    %13 = vector.broadcast %12 : vector<1x16xf32> to vector<2x16xf32>
    %14 = arith.addf %11, %13 : vector<2x16xf32>
    %15 = vector.extract_strided_slice %14 {offsets = [0, 0], sizes = [2, 8], strides = [1, 1]} : vector<2x16xf32> to vector<2x8xf32>
    %16 = vector.extract_strided_slice %14 {offsets = [0, 8], sizes = [2, 8], strides = [1, 1]} : vector<2x16xf32> to vector<2x8xf32>
    %cst_11 = arith.constant 0.000000e+00 : f32
    %17 = vector.broadcast %cst_11 : f32 to vector<2x8xf32>
    %18 = arith.maximumf %16, %17 : vector<2x8xf32>
    %19 = math.absf %16 : vector<2x8xf32>
    %cst_12 = arith.constant 0.000000e+00 : f32
    %20 = vector.broadcast %cst_12 : f32 to vector<2x8xf32>
    %21 = arith.subf %20, %19 : vector<2x8xf32>
    %22 = math.exp %21 : vector<2x8xf32>
    %23 = math.log1p %22 : vector<2x8xf32>
    %24 = arith.addf %18, %23 : vector<2x8xf32>
    %25 = math.sqrt %24 : vector<2x8xf32>
    %26 = arith.mulf %25, %1 : vector<2x8xf32>
    %27 = arith.addf %15, %26 : vector<2x8xf32>
    %c0_13 = arith.constant 0 : index
    %c0_14 = arith.constant 0 : index
    %28 = vector.load %arg6[%c0_13, %c0_14] : memref<8x64xf32, #tpu.memory_space<vmem>>, vector<8x64xf32>
    %cst_15 = arith.constant dense<0.000000e+00> : vector<2x64xf32>
    %29 = tpu.matmul %27, %28, %cst_15 {dimension_numbers = #tpu.dot_dimension_numbers<[1], [0], [0], [1], [0, 0, 1, 1], [], []>} : vector<2x8xf32>, vector<8x64xf32>, vector<2x64xf32> -> vector<2x64xf32>
    %30 = arith.addf %29, %7 : vector<2x64xf32>
    %31 = arith.negf %30 : vector<2x64xf32>
    %32 = math.exp %31 : vector<2x64xf32>
    %cst_16 = arith.constant 1.000000e+00 : f32
    %33 = vector.broadcast %cst_16 : f32 to vector<2x64xf32>
    %34 = arith.addf %33, %32 : vector<2x64xf32>
    %35 = arith.divf %33, %34 : vector<2x64xf32>
    %c0_17 = arith.constant 0 : index
    %c0_18 = arith.constant 0 : index
    %36 = vector.load %arg7[%c0_17, %c0_18] : memref<2x128xf32, #tpu.memory_space<vmem>>, vector<2x64xf32>
    tpu.vector_store %arg7[%c0_17, %c0_18], %35 {strides = array<i32>} : memref<2x128xf32, #tpu.memory_space<vmem>>, vector<2x64xf32>,
    %c0_19 = arith.constant 0 : index
    %c64 = arith.constant 64 : index
    %37 = vector.load %arg7[%c0_19, %c64] : memref<2x128xf32, #tpu.memory_space<vmem>>, vector<2x8xf32>
    tpu.vector_store %arg7[%c0_19, %c64], %27 {strides = array<i32>} : memref<2x128xf32, #tpu.memory_space<vmem>>, vector<2x8xf32>,
    %cst_20 = arith.constant 0.000000e+00 : f32
    %38 = vector.broadcast %cst_20 : f32 to vector<2x56xf32>
    %c0_21 = arith.constant 0 : index
    %c72 = arith.constant 72 : index
    %39 = vector.load %arg7[%c0_21, %c72] : memref<2x128xf32, #tpu.memory_space<vmem>>, vector<2x56xf32>
    tpu.vector_store %arg7[%c0_21, %c72], %38 {strides = array<i32>} : memref<2x128xf32, #tpu.memory_space<vmem>>, vector<2x56xf32>,
    return
  }
  func.func @transform_0(%arg0: i32) -> (i32, i32) {
    %c0_i32 = arith.constant 0 : i32
    %c0_i32_0 = arith.constant 0 : i32
    return %arg0, %c0_i32 : i32, i32
  }
  func.func @transform_1(%arg0: i32) -> (i32, i32) {
    %c0_i32 = arith.constant 0 : i32
    %c0_i32_0 = arith.constant 0 : i32
    %c0_i32_1 = arith.constant 0 : i32
    return %c0_i32, %c0_i32_0 : i32, i32
  }
  func.func @transform_2(%arg0: i32) -> (i32, i32) {
    %c0_i32 = arith.constant 0 : i32
    %c0_i32_0 = arith.constant 0 : i32
    %c0_i32_1 = arith.constant 0 : i32
    return %c0_i32, %c0_i32_0 : i32, i32
  }
  func.func @transform_3(%arg0: i32) -> (i32, i32) {
    %c0_i32 = arith.constant 0 : i32
    %c0_i32_0 = arith.constant 0 : i32
    %c0_i32_1 = arith.constant 0 : i32
    return %c0_i32, %c0_i32_0 : i32, i32
  }
  func.func @transform_4(%arg0: i32) -> (i32, i32) {
    %c0_i32 = arith.constant 0 : i32
    %c0_i32_0 = arith.constant 0 : i32
    %c0_i32_1 = arith.constant 0 : i32
    return %c0_i32, %c0_i32_0 : i32, i32
  }
  func.func @transform_5(%arg0: i32) -> (i32, i32) {
    %c0_i32 = arith.constant 0 : i32
    %c0_i32_0 = arith.constant 0 : i32
    %c0_i32_1 = arith.constant 0 : i32
    return %c0_i32, %c0_i32_0 : i32, i32
  }
  func.func @transform_6(%arg0: i32) -> (i32, i32) {
    %c0_i32 = arith.constant 0 : i32
    %c0_i32_0 = arith.constant 0 : i32
    return %arg0, %c0_i32 : i32, i32
  }
}

</mosaic_0001>

<llo_original>
// kernel: tpu_custom_call.1
$region0: #{tpu_custom_call.1}
  #allocation0 [shape = 'u32[]', space=smem, size = 0x4, offset = 0x4, fixed_abs, tag = 'smem constant byte address 0x4 - core index']
  #allocation1 [shape = 'u32[144,128]{1,0:T(1,128)}', space=vmem, size = 0x12000, scoped, tag = 'internal scratch']
  %s0 = inlined_call_operand.vmem [shape: f32[2,128], index: 0, kind: input, shape index: {}]
  %s1 = inlined_call_operand.vmem [shape: f32[128,128], index: 1, kind: input, shape index: {}]
  %s2 = inlined_call_operand.vmem [shape: f32[1,128], index: 2, kind: input, shape index: {}]
  %s3 = inlined_call_operand.vmem [shape: f32[128,16], index: 3, kind: input, shape index: {}]
  %s4 = inlined_call_operand.vmem [shape: f32[1,16], index: 4, kind: input, shape index: {}]
  %s5 = inlined_call_operand.vmem [shape: f32[8,64], index: 5, kind: input, shape index: {}]
  %s6 = inlined_call_operand.hbm [shape: f32[2,128], index: 6, kind: output, shape index: {}]
  %s7 = sld [smem:[#allocation0]]
  $region34: #{tpu_custom_call.1} parent=0
    _
  %s9 = ssub.s32 1, %s7
  %s10 = scalar_select 0, %s9, %s7
  $region1: #{tpu_custom_call.1} parent=0
    #allocation2 [shape = 'u8[1024]{0}', space=vmem, size = 0x400, scoped, tag = 'output window, operand 0, single buffered']
    #allocation3 [shape = 's32[1]{0}', space=sflag, size = 0x4, scoped, tag = 'scoped memory for tpu_custom_call.1']
    %11 = vsyncpa [#allocation3], 0
    // Predicated region
    $region2: #{tpu_custom_call.1} parent=1 // pred_check
      _
    $region3: #{tpu_custom_call.1} parent=1 // pred_check_branch
      %13 = sbr.rel (0) target = $region5
    $region4: #{tpu_custom_call.1} parent=1 // pred_region
      _
    $region5: #{tpu_custom_call.1} parent=1 // pred_fallthru
      _
    // Predicated region
    $region6: #{tpu_custom_call.1} parent=1 // pred_check
      _
    $region7: #{tpu_custom_call.1} parent=1 // pred_check_branch
      %15 = sbr.rel (0) target = $region9
    $region8: #{tpu_custom_call.1} parent=1 // pred_region
      _
    $region9: #{tpu_custom_call.1} parent=1 // pred_fallthru
      _
    // Predicated region
    $region10: #{tpu_custom_call.1} parent=1 // pred_check
      _
    $region11: #{tpu_custom_call.1} parent=1 // pred_check_branch
      %17 = sbr.rel (0) target = $region13
    $region12: #{tpu_custom_call.1} parent=1 // pred_region
      _
    $region13: #{tpu_custom_call.1} parent=1 // pred_fallthru
      _
    // Predicated region
    $region14: #{tpu_custom_call.1} parent=1 // pred_check
      _
    $region15: #{tpu_custom_call.1} parent=1 // pred_check_branch
      %19 = sbr.rel (0) target = $region17
    $region16: #{tpu_custom_call.1} parent=1 // pred_region
      _
    $region17: #{tpu_custom_call.1} parent=1 // pred_fallthru
      _
    // Predicated region
    $region18: #{tpu_custom_call.1} parent=1 // pred_check
      _
    $region19: #{tpu_custom_call.1} parent=1 // pred_check_branch
      %21 = sbr.rel (0) target = $region21
    $region20: #{tpu_custom_call.1} parent=1 // pred_region
      _
    $region21: #{tpu_custom_call.1} parent=1 // pred_fallthru
      _
    // Predicated region
    $region22: #{tpu_custom_call.1} parent=1 // pred_check
      _
    $region23: #{tpu_custom_call.1} parent=1 // pred_check_branch
      %23 = sbr.rel (0) target = $region25
    $region24: #{tpu_custom_call.1} parent=1 // pred_region
      _
    $region25: #{tpu_custom_call.1} parent=1 // pred_fallthru
      _
    %v24 = vld [vmem:[%s0] sm:$0x3]
    %v25 = vld [vmem:[%s1] sm:$0xff]
    %v26 = vld [vmem:[%s1 + $0x8] sm:$0xff]
    %v27 = vld [vmem:[%s1 + $0x10] sm:$0xff]
    %v28 = vld [vmem:[%s1 + $0x18] sm:$0xff]
    %v29 = vld [vmem:[%s1 + $0x20] sm:$0xff]
    %v30 = vld [vmem:[%s1 + $0x28] sm:$0xff]
    %v31 = vld [vmem:[%s1 + $0x30] sm:$0xff]
    %v32 = vld [vmem:[%s1 + $0x38] sm:$0xff]
    %v33 = vld [vmem:[%s1 + $0x40] sm:$0xff]
    %v34 = vld [vmem:[%s1 + $0x48] sm:$0xff]
    %v35 = vld [vmem:[%s1 + $0x50] sm:$0xff]
    %v36 = vld [vmem:[%s1 + $0x58] sm:$0xff]
    %v37 = vld [vmem:[%s1 + $0x60] sm:$0xff]
    %v38 = vld [vmem:[%s1 + $0x68] sm:$0xff]
    %v39 = vld [vmem:[%s1 + $0x70] sm:$0xff]
    %v40 = vld [vmem:[%s1 + $0x78] sm:$0xff]
    %v41 = vld [vmem:[%s2] sm:$0x1]
    %v43 = vlaneseq
    %v44 = vshrl.u32 %v43, 7
    %v45 = vsub.s32 0, %v44
    %v46 = vrot.slane %v41, %v45
    %48 = vmatprep.subr.mxu0 0.0
    %49 = vmatpush1.msra.mxu0 %v40
    %50 = vmatprep.subr.mxu0 0.0
    %51 = vmatpush1.msra.mxu0 %v39
    %52 = vmatprep.subr.mxu0 0.0
    %53 = vmatpush1.msra.mxu0 %v38
    %54 = vmatprep.subr.mxu0 0.0
    %55 = vmatpush1.msra.mxu0 %v37
    %56 = vmatprep.subr.mxu0 0.0
    %57 = vmatpush1.msra.mxu0 %v36
    %58 = vmatprep.subr.mxu0 0.0
    %59 = vmatpush1.msra.mxu0 %v35
    %60 = vmatprep.subr.mxu0 0.0
    %61 = vmatpush1.msra.mxu0 %v34
    %62 = vmatprep.subr.mxu0 0.0
    %63 = vmatpush1.msra.mxu0 %v33
    %64 = vmatprep.subr.mxu0 0.0
    %65 = vmatpush1.msra.mxu0 %v32
    %66 = vmatprep.subr.mxu0 0.0
    %67 = vmatpush1.msra.mxu0 %v31
    %68 = vmatprep.subr.mxu0 0.0
    %69 = vmatpush1.msra.mxu0 %v30
    %70 = vmatprep.subr.mxu0 0.0
    %71 = vmatpush1.msra.mxu0 %v29
    %72 = vmatprep.subr.mxu0 0.0
    %73 = vmatpush1.msra.mxu0 %v28
    %74 = vmatprep.subr.mxu0 0.0
    %75 = vmatpush1.msra.mxu0 %v27
    %76 = vmatprep.subr.mxu0 0.0
    %77 = vmatpush1.msra.mxu0 %v26
    %78 = vmatprep.subr.mxu0 0.0
    %79 = vmatpush1.msra.mxu0 %v25
    %80 = vmatprep.subr.mxu0 0.0
    %81 = vmatpush2.msra.mxu0 0.0
    %82 = vmatprep.subr.mxu0 0.0
    %83 = vmatpush2.msra.mxu0 0.0
    %84 = vmatprep.subr.mxu0 0.0
    %85 = vmatpush2.msra.mxu0 0.0
    %86 = vmatprep.subr.mxu0 0.0
    %87 = vmatpush2.msra.mxu0 0.0
    %88 = vmatprep.subr.mxu0 0.0
    %89 = vmatpush2.msra.mxu0 0.0
    %90 = vmatprep.subr.mxu0 0.0
    %91 = vmatpush2.msra.mxu0 0.0
    %92 = vmatprep.subr.mxu0 0.0
    %93 = vmatpush2.msra.mxu0 0.0
    %94 = vmatprep.subr.mxu0 0.0
    %95 = vmatpush2.msra.mxu0 0.0
    %96 = vmatprep.subr.mxu0 0.0
    %97 = vmatpush2.msra.mxu0 0.0
    %98 = vmatprep.subr.mxu0 0.0
    %99 = vmatpush2.msra.mxu0 0.0
    %100 = vmatprep.subr.mxu0 0.0
    %101 = vmatpush2.msra.mxu0 0.0
    %102 = vmatprep.subr.mxu0 0.0
    %103 = vmatpush2.msra.mxu0 0.0
    %104 = vmatprep.subr.mxu0 0.0
    %105 = vmatpush2.msra.mxu0 0.0
    %106 = vmatprep.subr.mxu0 0.0
    %107 = vmatpush2.msra.mxu0 0.0
    %108 = vmatprep.subr.mxu0 0.0
    %109 = vmatpush2.msra.mxu0 0.0
    %110 = vmatprep.subr.mxu0 0.0
    %111 = vmatpush2.msra.mxu0 0.0
    %112 = vmatprep.mubr.f32.mxu0 0.0
    %113 = vmatmul.mubr.f32.gmra.mxu0 %v24
    %v114 = vpop.f32.mrf.mxu0
    %v115 = vadd.f32 %v46, %v114
    %v116 = vpop.f32.mrf.mxu0
    %117 = vdwg.mxu0
    %v118 = vmax.f32 %v115, 0.0
    %v119 = vld [vmem:[%s3] sm:$0xff]
    %v120 = vld [vmem:[%s3 + $0x8] sm:$0xff]
    %v121 = vld [vmem:[%s3 + $0x10] sm:$0xff]
    %v122 = vld [vmem:[%s3 + $0x18] sm:$0xff]
    %v123 = vld [vmem:[%s3 + $0x20] sm:$0xff]
    %v124 = vld [vmem:[%s3 + $0x28] sm:$0xff]
    %v125 = vld [vmem:[%s3 + $0x30] sm:$0xff]
    %v126 = vld [vmem:[%s3 + $0x38] sm:$0xff]
    %v127 = vld [vmem:[%s3 + $0x40] sm:$0xff]
    %v128 = vld [vmem:[%s3 + $0x48] sm:$0xff]
    %v129 = vld [vmem:[%s3 + $0x50] sm:$0xff]
    %v130 = vld [vmem:[%s3 + $0x58] sm:$0xff]
    %v131 = vld [vmem:[%s3 + $0x60] sm:$0xff]
    %v132 = vld [vmem:[%s3 + $0x68] sm:$0xff]
    %v133 = vld [vmem:[%s3 + $0x70] sm:$0xff]
    %v134 = vld [vmem:[%s3 + $0x78] sm:$0xff]
    %v135 = vld [vmem:[%s4] sm:$0x1]
    %v137 = vlaneseq
    %v138 = vshrl.u32 %v137, 7
    %v139 = vsub.s32 0, %v138
    %v140 = vrot.slane %v135, %v139
    %142 = vmatprep.subr.mxu0 0.0
    %143 = vmatpush1.msra.mxu0 %v134
    %144 = vmatprep.subr.mxu0 0.0
    %145 = vmatpush1.msra.mxu0 %v133
    %146 = vmatprep.subr.mxu0 0.0
    %147 = vmatpush1.msra.mxu0 %v132
    %148 = vmatprep.subr.mxu0 0.0
    %149 = vmatpush1.msra.mxu0 %v131
    %150 = vmatprep.subr.mxu0 0.0
    %151 = vmatpush1.msra.mxu0 %v130
    %152 = vmatprep.subr.mxu0 0.0
    %153 = vmatpush1.msra.mxu0 %v129
    %154 = vmatprep.subr.mxu0 0.0
    %155 = vmatpush1.msra.mxu0 %v128
    %156 = vmatprep.subr.mxu0 0.0
    %157 = vmatpush1.msra.mxu0 %v127
    %158 = vmatprep.subr.mxu0 0.0
    %159 = vmatpush1.msra.mxu0 %v126
    %160 = vmatprep.subr.mxu0 0.0
    %161 = vmatpush1.msra.mxu0 %v125
    %162 = vmatprep.subr.mxu0 0.0
    %163 = vmatpush1.msra.mxu0 %v124
    %164 = vmatprep.subr.mxu0 0.0
    %165 = vmatpush1.msra.mxu0 %v123
    %166 = vmatprep.subr.mxu0 0.0
    %167 = vmatpush1.msra.mxu0 %v122
    %168 = vmatprep.subr.mxu0 0.0
    %169 = vmatpush1.msra.mxu0 %v121
    %170 = vmatprep.subr.mxu0 0.0
    %171 = vmatpush1.msra.mxu0 %v120
    %172 = vmatprep.subr.mxu0 0.0
    %173 = vmatpush1.msra.mxu0 %v119
    %174 = vmatprep.subr.mxu0 0.0
    %175 = vmatpush2.msra.mxu0 0.0
    %176 = vmatprep.subr.mxu0 0.0
    %177 = vmatpush2.msra.mxu0 0.0
    %178 = vmatprep.subr.mxu0 0.0
    %179 = vmatpush2.msra.mxu0 0.0
    %180 = vmatprep.subr.mxu0 0.0
    %181 = vmatpush2.msra.mxu0 0.0
    %182 = vmatprep.subr.mxu0 0.0
    %183 = vmatpush2.msra.mxu0 0.0
    %184 = vmatprep.subr.mxu0 0.0
    %185 = vmatpush2.msra.mxu0 0.0
    %186 = vmatprep.subr.mxu0 0.0
    %187 = vmatpush2.msra.mxu0 0.0
    %188 = vmatprep.subr.mxu0 0.0
    %189 = vmatpush2.msra.mxu0 0.0
    %190 = vmatprep.subr.mxu0 0.0
    %191 = vmatpush2.msra.mxu0 0.0
    %192 = vmatprep.subr.mxu0 0.0
    %193 = vmatpush2.msra.mxu0 0.0
    %194 = vmatprep.subr.mxu0 0.0
    %195 = vmatpush2.msra.mxu0 0.0
    %196 = vmatprep.subr.mxu0 0.0
    %197 = vmatpush2.msra.mxu0 0.0
    %198 = vmatprep.subr.mxu0 0.0
    %199 = vmatpush2.msra.mxu0 0.0
    %200 = vmatprep.subr.mxu0 0.0
    %201 = vmatpush2.msra.mxu0 0.0
    %202 = vmatprep.subr.mxu0 0.0
    %203 = vmatpush2.msra.mxu0 0.0
    %204 = vmatprep.subr.mxu0 0.0
    %205 = vmatpush2.msra.mxu0 0.0
    %206 = vmatprep.mubr.f32.mxu0 0.0
    %207 = vmatmul.mubr.f32.gmra.mxu0 %v118
    %v208 = vpop.f32.mrf.mxu0
    %v209 = vadd.f32 %v140, %v208
    %v210 = vpop.f32.mrf.mxu0
    %211 = vdwg.mxu0
    %v212 = vmax.f32 %v209, 0.0
    %v213 = vand.u32 2147483647, %v209
    %v214 = vsub.f32 0.0, %v213
    %v215 = vmul.f32 %v214, 1.442695
    %v216 = vpow.pop %v215
    %v217 = vadd.f32 %v216, 1.0
    %v218 = vlog2.pop %v217
    %v219 = vmul.f32 %v218, 0.6931472
    %v220 = vmul.f32 -0.5, %v216
    %v221 = vadd.f32 %v220, 1.0
    %v222 = vmul.f32 %v221, %v216
    %v223 = vand.u32 2147483647, %v216
    %vm224 = vcmp.lt.f32.partialorder %v223, 0.0004427343
    %v225 = vsel %vm224, %v222, %v219
    %v226 = vadd.f32 %v212, %v225
    %v227 = vrsqrt.pop %v226
    %v228 = vmul.f32 %v226, %v227
    %vm229 = vcmp.eq.f32.partialorder %v226, inf
    %v230 = vsel %vm229, %v226, %v228
    %vm231 = vcmp.eq.f32.partialorder %v226, 0.0
    %v232 = vand.u32 %v226, 2147483648
    %v233 = vsel %vm231, %v232, %v230
    %235 = vrot.lane.b32.xlu0 %v24, 64
    %v236 = vpop.permute.xlu0 %235
    %v238 = vmul.f32 %v233, %v236
    %240 = vrot.lane.b32.xlu0 %v238, 120
    %v241 = vpop.permute.xlu0 %240
    %v243 = vadd.f32 %v209, %v241
    %v244 = vld [vmem:[%s5] sm:$0xff]
    %vm245 = vcmask 64512
    %v247 = vsel %vm245, %v243, 0
    %249 = vmatprep.subr.mxu0 0.0
    %250 = vmatpush1.msra.mxu0 0.0
    %251 = vmatprep.subr.mxu0 0.0
    %252 = vmatpush1.msra.mxu0 0.0
    %253 = vmatprep.subr.mxu0 0.0
    %254 = vmatpush1.msra.mxu0 0.0
    %255 = vmatprep.subr.mxu0 0.0
    %256 = vmatpush1.msra.mxu0 0.0
    %257 = vmatprep.subr.mxu0 0.0
    %258 = vmatpush1.msra.mxu0 0.0
    %259 = vmatprep.subr.mxu0 0.0
    %260 = vmatpush1.msra.mxu0 0.0
    %261 = vmatprep.subr.mxu0 0.0
    %262 = vmatpush1.msra.mxu0 0.0
    %263 = vmatprep.subr.mxu0 0.0
    %264 = vmatpush1.msra.mxu0 0.0
    %265 = vmatprep.subr.mxu0 0.0
    %266 = vmatpush1.msra.mxu0 0.0
    %267 = vmatprep.subr.mxu0 0.0
    %268 = vmatpush1.msra.mxu0 0.0
    %269 = vmatprep.subr.mxu0 0.0
    %270 = vmatpush1.msra.mxu0 0.0
    %271 = vmatprep.subr.mxu0 0.0
    %272 = vmatpush1.msra.mxu0 0.0
    %273 = vmatprep.subr.mxu0 0.0
    %274 = vmatpush1.msra.mxu0 0.0
    %275 = vmatprep.subr.mxu0 0.0
    %276 = vmatpush1.msra.mxu0 0.0
    %277 = vmatprep.subr.mxu0 0.0
    %278 = vmatpush1.msra.mxu0 0.0
    %279 = vmatprep.subr.mxu0 0.0
    %280 = vmatpush1.msra.mxu0 %v244
    %281 = vmatprep.subr.mxu0 0.0
    %282 = vmatpush2.msra.mxu0 0.0
    %283 = vmatprep.subr.mxu0 0.0
    %284 = vmatpush2.msra.mxu0 0.0
    %285 = vmatprep.subr.mxu0 0.0
    %286 = vmatpush2.msra.mxu0 0.0
    %287 = vmatprep.subr.mxu0 0.0
    %288 = vmatpush2.msra.mxu0 0.0
    %289 = vmatprep.subr.mxu0 0.0
    %290 = vmatpush2.msra.mxu0 0.0
    %291 = vmatprep.subr.mxu0 0.0
    %292 = vmatpush2.msra.mxu0 0.0
    %293 = vmatprep.subr.mxu0 0.0
    %294 = vmatpush2.msra.mxu0 0.0
    %295 = vmatprep.subr.mxu0 0.0
    %296 = vmatpush2.msra.mxu0 0.0
    %297 = vmatprep.subr.mxu0 0.0
    %298 = vmatpush2.msra.mxu0 0.0
    %299 = vmatprep.subr.mxu0 0.0
    %300 = vmatpush2.msra.mxu0 0.0
    %301 = vmatprep.subr.mxu0 0.0
    %302 = vmatpush2.msra.mxu0 0.0
    %303 = vmatprep.subr.mxu0 0.0
    %304 = vmatpush2.msra.mxu0 0.0
    %305 = vmatprep.subr.mxu0 0.0
    %306 = vmatpush2.msra.mxu0 0.0
    %307 = vmatprep.subr.mxu0 0.0
    %308 = vmatpush2.msra.mxu0 0.0
    %309 = vmatprep.subr.mxu0 0.0
    %310 = vmatpush2.msra.mxu0 0.0
    %311 = vmatprep.subr.mxu0 0.0
    %312 = vmatpush2.msra.mxu0 0.0
    %313 = vmatprep.mubr.f32.mxu0 0.0
    %314 = vmatmul.mubr.f32.gmra.mxu0 %v247
    %v315 = vpop.f32.mrf.mxu0
    %v316 = vadd.f32 %v115, %v315
    %v317 = vpop.f32.mrf.mxu0
    %318 = vdwg.mxu0
    %v319 = vxor.u32 %v316, 2147483648
    %v320 = vmul.f32 %v319, 1.442695
    %v321 = vpow.pop %v320
    %v322 = vadd.f32 %v321, 1.0
    %v323 = vrcp.pop %v322
    %v324 = vmul.f32 1.0, %v323
    %vm325 = vcmask 517120
    %326 = vst.msk [vmem:[#allocation2] sm:$0x3] %vm325, %v324
    %327 = vrot.lane.b32.xlu0 %v243, 64
    %v328 = vpop.permute.xlu0 %327
    %vm330 = vcmask 583168
    %331 = vst.msk [vmem:[#allocation2] sm:$0x3] %vm330, %v328
    %vm332 = vcmask 1041984
    %333 = vst.msk [vmem:[#allocation2] sm:$0x3] %vm332, 0.0
    // Predicated region
    $region26: #{tpu_custom_call.1} parent=1 // pred_check
      _
    $region27: #{tpu_custom_call.1} parent=1 // pred_check_branch
      %335 = sbr.rel (0) target = $region29
    $region28: #{tpu_custom_call.1} parent=1 // pred_region
      %s337 = ssub.s32 32, 32
      %338 = vsyncadd [#allocation3], %s337
      %s340 = sshll.u32 [#allocation2], 4
      %s341 = int_to_ptr.vmem [resolvable:$true] %s340
      %343 = dma.vmem_to_hbm [thread:$0]  %s341, 32, %s6, [#allocation3]
    $region29: #{tpu_custom_call.1} parent=1 // pred_fallthru
      _
    // Predicated region
    $region30: #{tpu_custom_call.1} parent=1 // pred_check
      _
    $region31: #{tpu_custom_call.1} parent=1 // pred_check_branch
      %345 = sbr.rel (0) target = $region33
    $region32: #{tpu_custom_call.1} parent=1 // pred_region
      %346 = dma.done [#allocation3], 32
    $region33: #{tpu_custom_call.1} parent=1 // pred_fallthru
      _
    %347 = vsyncpa [#allocation3], 1

</llo_original>
